<compile_context>
chip_gen: v7x
topology: tpu7x:2x2x1
jax: 0.10.0
libtpu: 0.0.40
codegen_flags: <defaults>
</compile_context>

<pallas_src>
import functools

import jax
import jax.numpy as jnp
from jax import lax
from jax.experimental import pallas as pl
from jax.experimental.pallas import tpu as pltpu


# -----------------------------------------------------------------------------
# Kernel 1: fused QKV projection  (qkv = x @ [Wq|Wk|Wv] + [bq|bk|bv])
# -----------------------------------------------------------------------------
def _qkv_proj_kernel(scale, d_model, x_ref, w_ref, b_ref, q_ref, k_ref, v_ref):
    x = x_ref[...].astype(jnp.bfloat16)                # bf16 MXU inputs
    qkv = jnp.dot(x, w_ref[...], preferred_element_type=jnp.float32)
    qkv = qkv + b_ref[...]                             # f32 bias add
    D = d_model
    # Static, lane-aligned slices (D is a multiple of 128).
    q_ref[...] = (qkv[:, :D] * scale).astype(q_ref.dtype)   # fold 1/sqrt(d_k)
    k_ref[...] = qkv[:, D:2 * D].astype(k_ref.dtype)
    v_ref[...] = qkv[:, 2 * D:].astype(v_ref.dtype)


# -----------------------------------------------------------------------------
# Kernel 2: flash-attention style online-softmax attention
# -----------------------------------------------------------------------------
def _flash_attn_kernel(q_ref, k_ref, v_ref, o_ref, m_sc, l_sc, acc_sc):
    ki = pl.program_id(1)

    @pl.when(ki == 0)
    def _init():
        m_sc[...] = jnp.full_like(m_sc, -jnp.inf)
        l_sc[...] = jnp.zeros_like(l_sc)
        acc_sc[...] = jnp.zeros_like(acc_sc)

    # scores (tq, tk): contract last dims of q and k directly (no k.T copy).
    s = lax.dot_general(
        q_ref[...], k_ref[...],
        dimension_numbers=(((1,), (1,)), ((), ())),
        preferred_element_type=jnp.float32)

    m_prev = m_sc[...]
    m_new = jnp.maximum(m_prev, jnp.max(s, axis=-1, keepdims=True))
    alpha = jnp.exp(m_prev - m_new)
    p = jnp.exp(s - m_new)
    l_sc[...] = alpha * l_sc[...] + jnp.sum(p, axis=-1, keepdims=True)
    acc_sc[...] = alpha * acc_sc[...] + jnp.dot(
        p.astype(jnp.bfloat16), v_ref[...], preferred_element_type=jnp.float32)
    m_sc[...] = m_new

    @pl.when(ki == pl.num_programs(1) - 1)
    def _finalize():
        inv_l = pl.reciprocal(l_sc[...], approx=True)   # EUP vrcp, free slot
        o_ref[...] = (acc_sc[...] * inv_l).astype(o_ref.dtype)


def self_attention(x, wq, wk, wv, bq, bk, bv, *, d_k):
    """x: (S, D) f32; wq/wk/wv: (D, D) in (in, out) layout; biases: (1, D)."""
    S, D = x.shape
    assert S % 8 == 0 and D % 128 == 0, "tiles must respect the (8,128) rule"
    # TODO(synk): for S not a multiple of the tile size, add remainder handling
    # (padding or BoundedSlice); the demo shapes divide evenly.

    # Fuse the 3 projections into one matmul; bf16 weights halve the HBM weight
    # DMA (the dominant traffic at small S) and feed the MXU natively.
    w_qkv = jnp.concatenate([wq, wk, wv], axis=1).astype(jnp.bfloat16)   # (D, 3D)
    b_qkv = jnp.concatenate([bq, bk, bv], axis=1)                        # (1, 3D) f32

    scale = 1.0 / (float(d_k) ** 0.5)

    tm = min(128, S)        # projection row tile
    tq = min(128, S)        # query tile
    tk = min(128, S)        # key/value tile
    assert S % tm == 0 and S % tq == 0 and S % tk == 0

    q, k, v = pl.pallas_call(
        functools.partial(_qkv_proj_kernel, scale, D),
        grid=(S // tm,),
        in_specs=[
            pl.BlockSpec((tm, D), lambda i: (i, 0)),        # x row tile
            pl.BlockSpec((D, 3 * D), lambda i: (0, 0)),     # W_qkv (VMEM-resident)
            pl.BlockSpec((1, 3 * D), lambda i: (0, 0)),     # b_qkv (VMEM-resident)
        ],
        out_specs=(
            pl.BlockSpec((tm, D), lambda i: (i, 0)),
            pl.BlockSpec((tm, D), lambda i: (i, 0)),
            pl.BlockSpec((tm, D), lambda i: (i, 0)),
        ),
        out_shape=(
            jax.ShapeDtypeStruct((S, D), jnp.bfloat16),     # Q (pre-scaled)
            jax.ShapeDtypeStruct((S, D), jnp.bfloat16),     # K
            jax.ShapeDtypeStruct((S, D), jnp.bfloat16),     # V
        ),
        compiler_params=pltpu.CompilerParams(
            dimension_semantics=("parallel",)),
    )(x, w_qkv, b_qkv)

    out = pl.pallas_call(
        _flash_attn_kernel,
        grid=(S // tq, S // tk),
        in_specs=[
            pl.BlockSpec((tq, D), lambda qi, ki: (qi, 0)),
            pl.BlockSpec((tk, D), lambda qi, ki: (ki, 0)),
            pl.BlockSpec((tk, D), lambda qi, ki: (ki, 0)),
        ],
        out_specs=pl.BlockSpec((tq, D), lambda qi, ki: (qi, 0)),
        out_shape=jax.ShapeDtypeStruct((S, D), jnp.float32),
        scratch_shapes=[
            pltpu.VMEM((tq, 1), jnp.float32),   # running max  m
            pltpu.VMEM((tq, 1), jnp.float32),   # running sum  l
            pltpu.VMEM((tq, D), jnp.float32),   # output accumulator
        ],
        compiler_params=pltpu.CompilerParams(
            dimension_semantics=("parallel", "arbitrary")),
    )(q, k, v)
    return out


def _init_linear(key, d_in, d_out):
    """Deterministic torch.nn.Linear-style init: U(-1/sqrt(d_in), 1/sqrt(d_in))."""
    kw, kb = jax.random.split(key)
    bound = 1.0 / jnp.sqrt(jnp.float32(d_in))
    # Stored directly in (in, out) layout == torch weight (out, in) transposed.
    w = jax.random.uniform(kw, (d_in, d_out), jnp.float32, -bound, bound)
    b = jax.random.uniform(kb, (1, d_out), jnp.float32, -bound, bound)
    return w, b


def reference(x, wq, wk, wv, bq, bk, bv, d_k):
    q = x @ wq + bq
    k = x @ wk + bk
    v = x @ wv + bv
    qk = (q @ k.T) / jnp.sqrt(jnp.float32(d_k))
    attn = jax.nn.softmax(qk, axis=-1)
    return attn @ v


if __name__ == "__main__":
    seq_len = 8
    d_model = 128
    num_heads = 1
    d_k = d_model // num_heads

    root = jax.random.PRNGKey(0)
    kx, kq, kk, kv, kf = jax.random.split(root, 5)

    x = jax.random.normal(kx, (seq_len, d_model), jnp.float32)
    wq, bq = _init_linear(kq, d_model, d_model)
    wk, bk = _init_linear(kk, d_model, d_model)
    wv, bv = _init_linear(kv, d_model, d_model)
    # fc_out params exist in the module but are unused in forward().
    wo, bo = _init_linear(kf, d_model, d_model)  # noqa: F841

    out = self_attention(x, wq, wk, wv, bq, bk, bv, d_k=d_k)
    out = jax.block_until_ready(out)

    ref = reference(x, wq, wk, wv, bq, bk, bv, d_k)
    assert out.shape == (seq_len, d_model)
    # bf16 MXU inputs (f32 accumulation) -> looser tolerance than the f32 path.
    assert jnp.allclose(out, ref, atol=2e-2, rtol=2e-2), "mismatch vs reference"

    print("KERNEL_OK")
</pallas_src>

<mosaic_0001>
module attributes {stable_mosaic.version = 11 : i64} {
  func.func @_qkv_proj_kernel(%arg0: i32, %arg1: memref<8x128xf32, #tpu.memory_space<vmem>>, %arg2: memref<128x384xbf16, #tpu.memory_space<vmem>>, %arg3: memref<1x384xf32, #tpu.memory_space<vmem>>, %arg4: memref<8x128xbf16, #tpu.memory_space<vmem>>, %arg5: memref<8x128xbf16, #tpu.memory_space<vmem>>, %arg6: memref<8x128xbf16, #tpu.memory_space<vmem>>) attributes {dimension_semantics = [#tpu.dimension_semantics<parallel>], iteration_bounds = array<i64: 1>, scalar_prefetch = 0 : i64, scratch_operands = 0 : i64, tpu.core_type = #tpu.core_type<tc>, window_params = [{transform_indices = @transform_0, window_bounds = array<i64: 8, 128>}, {pipeline_mode = #tpu.pipeline_mode<synchronous>, transform_indices = @transform_1, window_bounds = array<i64: 128, 384>}, {pipeline_mode = #tpu.pipeline_mode<synchronous>, transform_indices = @transform_2, window_bounds = array<i64: 1, 384>}, {transform_indices = @transform_3, window_bounds = array<i64: 8, 128>}, {transform_indices = @transform_4, window_bounds = array<i64: 8, 128>}, {transform_indices = @transform_5, window_bounds = array<i64: 8, 128>}]} {
    %c0 = arith.constant 0 : index
    %c0_0 = arith.constant 0 : index
    %0 = vector.load %arg1[%c0, %c0_0] : memref<8x128xf32, #tpu.memory_space<vmem>>, vector<8x128xf32>
    %1 = arith.truncf %0 : vector<8x128xf32> to vector<8x128xbf16>
    %c0_1 = arith.constant 0 : index
    %c0_2 = arith.constant 0 : index
    %2 = vector.load %arg2[%c0_1, %c0_2] : memref<128x384xbf16, #tpu.memory_space<vmem>>, vector<128x384xbf16>
    %cst = arith.constant dense<0.000000e+00> : vector<8x384xf32>
    %3 = tpu.matmul %1, %2, %cst {dimension_numbers = #tpu.dot_dimension_numbers<[1], [0], [0], [1], [0, 0, 1, 1], [], []>} : vector<8x128xbf16>, vector<128x384xbf16>, vector<8x384xf32> -> vector<8x384xf32>
    %c0_3 = arith.constant 0 : index
    %c0_4 = arith.constant 0 : index
    %4 = vector.load %arg3[%c0_3, %c0_4] : memref<1x384xf32, #tpu.memory_space<vmem>>, vector<1x384xf32>
    %5 = vector.broadcast %4 : vector<1x384xf32> to vector<8x384xf32>
    %6 = arith.addf %3, %5 : vector<8x384xf32>
    %7 = vector.extract_strided_slice %6 {offsets = [0, 0], sizes = [8, 128], strides = [1, 1]} : vector<8x384xf32> to vector<8x128xf32>
    %cst_5 = arith.constant 0.0883883461 : f32
    %8 = vector.broadcast %cst_5 : f32 to vector<8x128xf32>
    %9 = arith.mulf %7, %8 : vector<8x128xf32>
    %10 = arith.truncf %9 : vector<8x128xf32> to vector<8x128xbf16>
    %c0_6 = arith.constant 0 : index
    %c0_7 = arith.constant 0 : index
    %11 = vector.load %arg4[%c0_6, %c0_7] : memref<8x128xbf16, #tpu.memory_space<vmem>>, vector<8x128xbf16>
    tpu.vector_store %arg4[%c0_6, %c0_7], %10 {strides = array<i32>} : memref<8x128xbf16, #tpu.memory_space<vmem>>, vector<8x128xbf16>,
    %12 = vector.extract_strided_slice %6 {offsets = [0, 128], sizes = [8, 128], strides = [1, 1]} : vector<8x384xf32> to vector<8x128xf32>
    %13 = arith.truncf %12 : vector<8x128xf32> to vector<8x128xbf16>
    %c0_8 = arith.constant 0 : index
    %c0_9 = arith.constant 0 : index
    %14 = vector.load %arg5[%c0_8, %c0_9] : memref<8x128xbf16, #tpu.memory_space<vmem>>, vector<8x128xbf16>
    tpu.vector_store %arg5[%c0_8, %c0_9], %13 {strides = array<i32>} : memref<8x128xbf16, #tpu.memory_space<vmem>>, vector<8x128xbf16>,
    %15 = vector.extract_strided_slice %6 {offsets = [0, 256], sizes = [8, 128], strides = [1, 1]} : vector<8x384xf32> to vector<8x128xf32>
    %16 = arith.truncf %15 : vector<8x128xf32> to vector<8x128xbf16>
    %c0_10 = arith.constant 0 : index
    %c0_11 = arith.constant 0 : index
    %17 = vector.load %arg6[%c0_10, %c0_11] : memref<8x128xbf16, #tpu.memory_space<vmem>>, vector<8x128xbf16>
    tpu.vector_store %arg6[%c0_10, %c0_11], %16 {strides = array<i32>} : memref<8x128xbf16, #tpu.memory_space<vmem>>, vector<8x128xbf16>,
    return
  }
  func.func @transform_0(%arg0: i32) -> (i32, i32) {
    %c0_i32 = arith.constant 0 : i32
    %c0_i32_0 = arith.constant 0 : i32
    return %arg0, %c0_i32 : i32, i32
  }
  func.func @transform_1(%arg0: i32) -> (i32, i32) {
    %c0_i32 = arith.constant 0 : i32
    %c0_i32_0 = arith.constant 0 : i32
    %c0_i32_1 = arith.constant 0 : i32
    return %c0_i32, %c0_i32_0 : i32, i32
  }
  func.func @transform_2(%arg0: i32) -> (i32, i32) {
    %c0_i32 = arith.constant 0 : i32
    %c0_i32_0 = arith.constant 0 : i32
    %c0_i32_1 = arith.constant 0 : i32
    return %c0_i32, %c0_i32_0 : i32, i32
  }
  func.func @transform_3(%arg0: i32) -> (i32, i32) {
    %c0_i32 = arith.constant 0 : i32
    %c0_i32_0 = arith.constant 0 : i32
    return %arg0, %c0_i32 : i32, i32
  }
  func.func @transform_4(%arg0: i32) -> (i32, i32) {
    %c0_i32 = arith.constant 0 : i32
    %c0_i32_0 = arith.constant 0 : i32
    return %arg0, %c0_i32 : i32, i32
  }
  func.func @transform_5(%arg0: i32) -> (i32, i32) {
    %c0_i32 = arith.constant 0 : i32
    %c0_i32_0 = arith.constant 0 : i32
    return %arg0, %c0_i32 : i32, i32
  }
}

</mosaic_0001>

<llo_original>
// kernel: tpu_custom_call.1
$region0: #{tpu_custom_call.1}
  #allocation0 [shape = 'u32[]', space=smem, size = 0x4, offset = 0x4, fixed_abs, tag = 'smem constant byte address 0x4 - core index']
  #allocation1 [shape = 'u32[144,128]{1,0:T(1,128)}', space=vmem, size = 0x12000, scoped, tag = 'internal scratch']
  %s0 = inlined_call_operand.hbm [shape: f32[8,128], index: 0, kind: input, shape index: {}]
  %s1 = inlined_call_operand.hbm [shape: bf16[128,384], index: 1, kind: input, shape index: {}]
  %s2 = inlined_call_operand.vmem [shape: f32[1,384], index: 2, kind: input, shape index: {}]
  %s3 = inlined_call_operand.hbm [shape: bf16[8,128], index: 3, kind: output, shape index: {0}]
  %s4 = inlined_call_operand.hbm [shape: bf16[8,128], index: 4, kind: output, shape index: {1}]
  %s5 = inlined_call_operand.hbm [shape: bf16[8,128], index: 5, kind: output, shape index: {2}]
  %6 = xla_tuple %s3, %s4, %s5
  %s7 = sld [smem:[#allocation0]]
  $region46: #{tpu_custom_call.1} parent=0
    _
  %s9 = ssub.s32 1, %s7
  %s10 = scalar_select 0, %s9, %s7
  $region1: #{tpu_custom_call.1} parent=0
    #allocation2 [shape = 'u8[4096]{0}', space=vmem, size = 0x1000, scoped, tag = 'input window, operand 0, single buffered']
    #allocation3 [shape = 's32[1]{0}', space=sflag, size = 0x4, scoped, tag = 'scoped memory for tpu_custom_call.1']
    #allocation4 [shape = 's32[1]{0}', space=sflag, size = 0x4, scoped, tag = 'scoped memory for tpu_custom_call.1']
    #allocation5 [shape = 'u8[98304]{0}', space=vmem, size = 0x18000, scoped, tag = 'input window, operand 1, single buffered']
    #allocation6 [shape = 's32[1]{0}', space=sflag, size = 0x4, scoped, tag = 'scoped memory for tpu_custom_call.1']
    #allocation7 [shape = 'u8[2048]{0}', space=vmem, size = 0x800, scoped, tag = 'output window, operand 0, single buffered']
    #allocation8 [shape = 'u8[2048]{0}', space=vmem, size = 0x800, scoped, tag = 'output window, operand 1, single buffered']
    #allocation9 [shape = 's32[1]{0}', space=sflag, size = 0x4, scoped, tag = 'scoped memory for tpu_custom_call.1']
    #allocation10 [shape = 'u8[2048]{0}', space=vmem, size = 0x800, scoped, tag = 'output window, operand 2, single buffered']
    %11 = vsyncpa [#allocation3], 0
    %12 = vsyncpa [#allocation6], 0
    %13 = vsyncpa [#allocation4], 0
    %14 = vsyncpa [#allocation9], 0
    // Predicated region
    $region2: #{tpu_custom_call.1} parent=1 // pred_check
      _
    $region3: #{tpu_custom_call.1} parent=1 // pred_check_branch
      %16 = sbr.rel (0) target = $region5
    $region4: #{tpu_custom_call.1} parent=1 // pred_region
      %s18 = ssub.s32 128, 128
      %19 = vsyncadd [#allocation3], %s18
      %s21 = sshll.u32 [#allocation2], 4
      %s22 = int_to_ptr.vmem [resolvable:$true] %s21
      %24 = dma.hbm_to_vmem [thread:$0]  %s0, 128, %s22, [#allocation3]
    $region5: #{tpu_custom_call.1} parent=1 // pred_fallthru
      _
    // Predicated region
    $region6: #{tpu_custom_call.1} parent=1 // pred_check
      _
    $region7: #{tpu_custom_call.1} parent=1 // pred_check_branch
      %26 = sbr.rel (0) target = $region9
    $region8: #{tpu_custom_call.1} parent=1 // pred_region
      %s28 = ssub.s32 3072, 3072
      %29 = vsyncadd [#allocation6], %s28
      %s30 = sshll.u32 [#allocation5], 4
      %s31 = int_to_ptr.vmem [resolvable:$true] %s30
      %36 = dma.hbm_to_vmem [thread:$0]  %s1, 3072, %s31, [#allocation6], 192, 192, 12
    $region9: #{tpu_custom_call.1} parent=1 // pred_fallthru
      _
    // Predicated region
    $region10: #{tpu_custom_call.1} parent=1 // pred_check
      _
    $region11: #{tpu_custom_call.1} parent=1 // pred_check_branch
      %38 = sbr.rel (0) target = $region13
    $region12: #{tpu_custom_call.1} parent=1 // pred_region
      _
    $region13: #{tpu_custom_call.1} parent=1 // pred_fallthru
      _
    // Predicated region
    $region14: #{tpu_custom_call.1} parent=1 // pred_check
      _
    $region15: #{tpu_custom_call.1} parent=1 // pred_check_branch
      %40 = sbr.rel (0) target = $region17
    $region16: #{tpu_custom_call.1} parent=1 // pred_region
      %41 = dma.done [#allocation3], 128
    $region17: #{tpu_custom_call.1} parent=1 // pred_fallthru
      _
    // Predicated region
    $region18: #{tpu_custom_call.1} parent=1 // pred_check
      _
    $region19: #{tpu_custom_call.1} parent=1 // pred_check_branch
      %43 = sbr.rel (0) target = $region21
    $region20: #{tpu_custom_call.1} parent=1 // pred_region
      %44 = dma.done [#allocation6], 3072
    $region21: #{tpu_custom_call.1} parent=1 // pred_fallthru
      _
    %v46 = vld [vmem:[#allocation2] sm:$0xff]
    %v47 = vpack.c.bf16 %v46, %v46
    %v48 = vld [vmem:[#allocation5] sm:$0xff]
    %v49 = vld [vmem:[#allocation5 + $0x8] sm:$0xf]
    %v50 = vld [vmem:[#allocation5 + $0xc] sm:$0xff]
    %v51 = vld [vmem:[#allocation5 + $0x14] sm:$0xf]
    %v52 = vld [vmem:[#allocation5 + $0x18] sm:$0xff]
    %v53 = vld [vmem:[#allocation5 + $0x20] sm:$0xf]
    %v54 = vld [vmem:[#allocation5 + $0x24] sm:$0xff]
    %v55 = vld [vmem:[#allocation5 + $0x2c] sm:$0xf]
    %v56 = vld [vmem:[#allocation5 + $0x30] sm:$0xff]
    %v57 = vld [vmem:[#allocation5 + $0x38] sm:$0xf]
    %v58 = vld [vmem:[#allocation5 + $0x3c] sm:$0xff]
    %v59 = vld [vmem:[#allocation5 + $0x44] sm:$0xf]
    %v60 = vld [vmem:[#allocation5 + $0x48] sm:$0xff]
    %v61 = vld [vmem:[#allocation5 + $0x50] sm:$0xf]
    %v62 = vld [vmem:[#allocation5 + $0x54] sm:$0xff]
    %v63 = vld [vmem:[#allocation5 + $0x5c] sm:$0xf]
    %v64 = vld [vmem:[#allocation5 + $0x60] sm:$0xff]
    %v65 = vld [vmem:[#allocation5 + $0x68] sm:$0xf]
    %v66 = vld [vmem:[#allocation5 + $0x6c] sm:$0xff]
    %v67 = vld [vmem:[#allocation5 + $0x74] sm:$0xf]
    %v68 = vld [vmem:[#allocation5 + $0x78] sm:$0xff]
    %v69 = vld [vmem:[#allocation5 + $0x80] sm:$0xf]
    %v70 = vld [vmem:[#allocation5 + $0x84] sm:$0xff]
    %v71 = vld [vmem:[#allocation5 + $0x8c] sm:$0xf]
    %v72 = vld [vmem:[#allocation5 + $0x90] sm:$0xff]
    %v73 = vld [vmem:[#allocation5 + $0x98] sm:$0xf]
    %v74 = vld [vmem:[#allocation5 + $0x9c] sm:$0xff]
    %v75 = vld [vmem:[#allocation5 + $0xa4] sm:$0xf]
    %v76 = vld [vmem:[#allocation5 + $0xa8] sm:$0xff]
    %v77 = vld [vmem:[#allocation5 + $0xb0] sm:$0xf]
    %v78 = vld [vmem:[#allocation5 + $0xb4] sm:$0xff]
    %v79 = vld [vmem:[#allocation5 + $0xbc] sm:$0xf]
    %v80 = vld [vmem:[%s2] sm:$0x7]
    %v82 = vlaneseq
    %v83 = vshrl.u32 %v82, 7
    %v84 = vsub.s32 0, %v83
    %v85 = vrot.slane %v80, %v84
    %v86 = vlaneseq
    %v87 = vshrl.u32 %v86, 7
    %v88 = vsub.s32 1, %v87
    %v89 = vrot.slane %v80, %v88
    %v90 = vlaneseq
    %v91 = vshrl.u32 %v90, 7
    %v92 = vsub.s32 2, %v91
    %v93 = vrot.slane %v80, %v92
    %v129 = vunpack.c.l.b16 %v48
    %v130 = vunpack.c.h.b16 %v48
    %v131 = vunpack.c.l.b16 %v49
    %v132 = vunpack.c.l.b16 %v50
    %v133 = vunpack.c.h.b16 %v50
    %v134 = vunpack.c.l.b16 %v51
    %v135 = vunpack.c.l.b16 %v52
    %v136 = vunpack.c.h.b16 %v52
    %v137 = vunpack.c.l.b16 %v53
    %v138 = vunpack.c.l.b16 %v54
    %v139 = vunpack.c.h.b16 %v54
    %v140 = vunpack.c.l.b16 %v55
    %v141 = vunpack.c.l.b16 %v56
    %v142 = vunpack.c.h.b16 %v56
    %v143 = vunpack.c.l.b16 %v57
    %v144 = vunpack.c.l.b16 %v58
    %v145 = vunpack.c.h.b16 %v58
    %v146 = vunpack.c.l.b16 %v59
    %v147 = vunpack.c.l.b16 %v60
    %v148 = vunpack.c.h.b16 %v60
    %v149 = vunpack.c.l.b16 %v61
    %v150 = vunpack.c.l.b16 %v62
    %v151 = vunpack.c.h.b16 %v62
    %v152 = vunpack.c.l.b16 %v63
    %v153 = vunpack.c.l.b16 %v64
    %v154 = vunpack.c.h.b16 %v64
    %v155 = vunpack.c.l.b16 %v65
    %v156 = vunpack.c.l.b16 %v66
    %v157 = vunpack.c.h.b16 %v66
    %v158 = vunpack.c.l.b16 %v67
    %v159 = vunpack.c.l.b16 %v68
    %v160 = vunpack.c.h.b16 %v68
    %v161 = vunpack.c.l.b16 %v69
    %v162 = vunpack.c.l.b16 %v70
    %v163 = vunpack.c.h.b16 %v70
    %v164 = vunpack.c.l.b16 %v71
    %v165 = vunpack.c.l.b16 %v72
    %v166 = vunpack.c.h.b16 %v72
    %v167 = vunpack.c.l.b16 %v73
    %v168 = vunpack.c.l.b16 %v74
    %v169 = vunpack.c.h.b16 %v74
    %v170 = vunpack.c.l.b16 %v75
    %v171 = vunpack.c.l.b16 %v76
    %v172 = vunpack.c.h.b16 %v76
    %v173 = vunpack.c.l.b16 %v77
    %v174 = vunpack.c.l.b16 %v78
    %v175 = vunpack.c.h.b16 %v78
    %v176 = vunpack.c.l.b16 %v79
    %v177 = vpack.c.b16 %v132, %v129
    %v178 = vpack.c.b16 %v133, %v130
    %v179 = vpack.c.b16 %v134, %v131
    %v180 = vpack.c.b16 %v138, %v135
    %v181 = vpack.c.b16 %v139, %v136
    %v182 = vpack.c.b16 %v140, %v137
    %v183 = vpack.c.b16 %v144, %v141
    %v184 = vpack.c.b16 %v145, %v142
    %v185 = vpack.c.b16 %v146, %v143
    %v186 = vpack.c.b16 %v150, %v147
    %v187 = vpack.c.b16 %v151, %v148
    %v188 = vpack.c.b16 %v152, %v149
    %v189 = vpack.c.b16 %v156, %v153
    %v190 = vpack.c.b16 %v157, %v154
    %v191 = vpack.c.b16 %v158, %v155
    %v192 = vpack.c.b16 %v162, %v159
    %v193 = vpack.c.b16 %v163, %v160
    %v194 = vpack.c.b16 %v164, %v161
    %v195 = vpack.c.b16 %v168, %v165
    %v196 = vpack.c.b16 %v169, %v166
    %v197 = vpack.c.b16 %v170, %v167
    %v198 = vpack.c.b16 %v174, %v171
    %v199 = vpack.c.b16 %v175, %v172
    %v200 = vpack.c.b16 %v176, %v173
    %225 = vmatprep.subr.bf16.mxu0 %v178
    %226 = vmatpush1.bf16.msra.mxu0 %v177
    %227 = vmatprep.subr.bf16.mxu0 %v181
    %228 = vmatpush1.bf16.msra.mxu0 %v180
    %229 = vmatprep.subr.bf16.mxu0 %v184
    %230 = vmatpush1.bf16.msra.mxu0 %v183
    %231 = vmatprep.subr.bf16.mxu0 %v187
    %232 = vmatpush1.bf16.msra.mxu0 %v186
    %233 = vmatprep.subr.bf16.mxu0 %v190
    %234 = vmatpush1.bf16.msra.mxu0 %v189
    %235 = vmatprep.subr.bf16.mxu0 %v193
    %236 = vmatpush1.bf16.msra.mxu0 %v192
    %237 = vmatprep.subr.bf16.mxu0 %v196
    %238 = vmatpush1.bf16.msra.mxu0 %v195
    %239 = vmatprep.subr.bf16.mxu0 %v199
    %240 = vmatpush1.bf16.msra.mxu0 %v198
    %241 = vmatprep.subr.bf16.mxu0 0
    %242 = vmatpush1.bf16.msra.mxu0 0
    %243 = vmatprep.subr.bf16.mxu0 0
    %244 = vmatpush1.bf16.msra.mxu0 0
    %245 = vmatprep.subr.bf16.mxu0 0
    %246 = vmatpush1.bf16.msra.mxu0 0
    %247 = vmatprep.subr.bf16.mxu0 0
    %248 = vmatpush1.bf16.msra.mxu0 0
    %249 = vmatprep.subr.bf16.mxu0 0
    %250 = vmatpush1.bf16.msra.mxu0 0
    %251 = vmatprep.subr.bf16.mxu0 0
    %252 = vmatpush1.bf16.msra.mxu0 0
    %253 = vmatprep.subr.bf16.mxu0 0
    %254 = vmatpush1.bf16.msra.mxu0 0
    %255 = vmatprep.subr.bf16.mxu0 0
    %256 = vmatpush1.bf16.msra.mxu0 0
    %257 = vmatprep.mubr.bf16.mxu0 0
    %258 = vmatmul.mubr.bf16.gmra.mrb[0].mxu0 %v47
    %v259 = vpop.f32.mrb[0].mxu0
    %v260 = vadd.f32 %v85, %v259
    %v261 = vpop.f32.mrb[0].mxu0
    %v262 = vadd.f32 %v89, %v261
    %v263 = vpop.f32.mrb[0].mxu0
    %v264 = vpop.f32.mrb[0].mxu0
    %265 = vdwg.mxu0
    %266 = vmatprep.subr.bf16.mxu0 0
    %267 = vmatpush1.bf16.msra.mxu0 %v179
    %268 = vmatprep.subr.bf16.mxu0 0
    %269 = vmatpush1.bf16.msra.mxu0 %v182
    %270 = vmatprep.subr.bf16.mxu0 0
    %271 = vmatpush1.bf16.msra.mxu0 %v185
    %272 = vmatprep.subr.bf16.mxu0 0
    %273 = vmatpush1.bf16.msra.mxu0 %v188
    %274 = vmatprep.subr.bf16.mxu0 0
    %275 = vmatpush1.bf16.msra.mxu0 %v191
    %276 = vmatprep.subr.bf16.mxu0 0
    %277 = vmatpush1.bf16.msra.mxu0 %v194
    %278 = vmatprep.subr.bf16.mxu0 0
    %279 = vmatpush1.bf16.msra.mxu0 %v197
    %280 = vmatprep.subr.bf16.mxu0 0
    %281 = vmatpush1.bf16.msra.mxu0 %v200
    %282 = vmatprep.subr.bf16.mxu0 0
    %283 = vmatpush1.bf16.msra.mxu0 0
    %284 = vmatprep.subr.bf16.mxu0 0
    %285 = vmatpush1.bf16.msra.mxu0 0
    %286 = vmatprep.subr.bf16.mxu0 0
    %287 = vmatpush1.bf16.msra.mxu0 0
    %288 = vmatprep.subr.bf16.mxu0 0
    %289 = vmatpush1.bf16.msra.mxu0 0
    %290 = vmatprep.subr.bf16.mxu0 0
    %291 = vmatpush1.bf16.msra.mxu0 0
    %292 = vmatprep.subr.bf16.mxu0 0
    %293 = vmatpush1.bf16.msra.mxu0 0
    %294 = vmatprep.subr.bf16.mxu0 0
    %295 = vmatpush1.bf16.msra.mxu0 0
    %296 = vmatprep.subr.bf16.mxu0 0
    %297 = vmatpush1.bf16.msra.mxu0 0
    %298 = vmatprep.mubr.bf16.mxu0 0
    %299 = vmatmul.mubr.bf16.gmra.mrb[0].mxu0 %v47
    %v300 = vpop.f32.mrb[0].mxu0
    %v301 = vadd.f32 %v93, %v300
    %v302 = vpop.f32.mrb[0].mxu0
    %v303 = vpop.f32.mrb[0].mxu0
    %v304 = vpop.f32.mrb[0].mxu0
    %305 = vdwg.mxu0
    %v306 = vmul.f32 %v260, 0.088388346
    %v307 = vpack.c.bf16 %v306, %v306
    %308 = vst [vmem:[#allocation7] sm:$0xf] %v307
    %v309 = vpack.c.bf16 %v262, %v262
    %310 = vst [vmem:[#allocation8] sm:$0xf] %v309
    %v311 = vpack.c.bf16 %v301, %v301
    %312 = vst [vmem:[#allocation10] sm:$0xf] %v311
    // Predicated region
    $region22: #{tpu_custom_call.1} parent=1 // pred_check
      _
    $region23: #{tpu_custom_call.1} parent=1 // pred_check_branch
      %314 = sbr.rel (0) target = $region25
    $region24: #{tpu_custom_call.1} parent=1 // pred_region
      %s316 = ssub.s32 64, 64
      %317 = vsyncadd [#allocation4], %s316
      %s319 = sshll.u32 [#allocation7], 4
      %s320 = int_to_ptr.vmem [resolvable:$true] %s319
      %322 = dma.vmem_to_hbm [thread:$0]  %s320, 64, %s3, [#allocation4]
    $region25: #{tpu_custom_call.1} parent=1 // pred_fallthru
      _
    // Predicated region
    $region26: #{tpu_custom_call.1} parent=1 // pred_check
      _
    $region27: #{tpu_custom_call.1} parent=1 // pred_check_branch
      %324 = sbr.rel (0) target = $region29
    $region28: #{tpu_custom_call.1} parent=1 // pred_region
      %s326 = ssub.s32 64, 64
      %327 = vsyncadd [#allocation9], %s326
      %s329 = sshll.u32 [#allocation8], 4
      %s330 = int_to_ptr.vmem [resolvable:$true] %s329
      %332 = dma.vmem_to_hbm [thread:$0]  %s330, 64, %s4, [#allocation9]
    $region29: #{tpu_custom_call.1} parent=1 // pred_fallthru
      _
    // Predicated region
    $region30: #{tpu_custom_call.1} parent=1 // pred_check
      _
    $region31: #{tpu_custom_call.1} parent=1 // pred_check_branch
      %334 = sbr.rel (0) target = $region33
    $region32: #{tpu_custom_call.1} parent=1 // pred_region
      %s336 = ssub.s32 64, 64
      %337 = vsyncadd [#allocation9], %s336
      %s339 = sshll.u32 [#allocation10], 4
      %s340 = int_to_ptr.vmem [resolvable:$true] %s339
      %342 = dma.vmem_to_hbm [thread:$0]  %s340, 64, %s5, [#allocation9]
    $region33: #{tpu_custom_call.1} parent=1 // pred_fallthru
      _
    // Predicated region
    $region34: #{tpu_custom_call.1} parent=1 // pred_check
      _
    $region35: #{tpu_custom_call.1} parent=1 // pred_check_branch
      %344 = sbr.rel (0) target = $region37
    $region36: #{tpu_custom_call.1} parent=1 // pred_region
      %345 = dma.done [#allocation4], 64
    $region37: #{tpu_custom_call.1} parent=1 // pred_fallthru
      _
    // Predicated region
    $region38: #{tpu_custom_call.1} parent=1 // pred_check
      _
    $region39: #{tpu_custom_call.1} parent=1 // pred_check_branch
      %347 = sbr.rel (0) target = $region41
    $region40: #{tpu_custom_call.1} parent=1 // pred_region
      %348 = dma.done [#allocation9], 64
    $region41: #{tpu_custom_call.1} parent=1 // pred_fallthru
      _
    // Predicated region
    $region42: #{tpu_custom_call.1} parent=1 // pred_check
      _
    $region43: #{tpu_custom_call.1} parent=1 // pred_check_branch
      %350 = sbr.rel (0) target = $region45
    $region44: #{tpu_custom_call.1} parent=1 // pred_region
      %351 = dma.done [#allocation9], 64
    $region45: #{tpu_custom_call.1} parent=1 // pred_fallthru
      _
    %352 = vsyncpa [#allocation3], 1
    %353 = vsyncpa [#allocation6], 1
    %354 = vsyncpa [#allocation4], 1
    %355 = vsyncpa [#allocation9], 1

</llo_original>
